<compile_context>
chip_gen: v6e
topology: v6e:2x2x1
jax: 0.10.0
libtpu: 0.0.40
codegen_flags: <defaults>
</compile_context>

<pallas_src>
import functools

import jax
import jax.numpy as jnp
from jax.experimental import pallas as pl
from jax.experimental.pallas import tpu as pltpu

_MIB = 1024 * 1024


def _round_up(x, m):
    return ((x + m - 1) // m) * m


def _cdiv(a, b):
    return (a + b - 1) // b


def _sublane_packing(dtype):
    # Rows per packed 32-bit sublane group: 8 (f32), 16 (bf16/f16), 32 (int8/fp8).
    return 8 * max(1, 4 // jnp.dtype(dtype).itemsize)


def _detect_tpu():
    """(vmem_bytes_per_core, tensorcores_per_chip) with conservative fallbacks."""
    kind = ""
    try:
        kind = jax.devices()[0].device_kind.lower()
    except Exception:
        pass
    vmem = None
    try:
        vmem = int(getattr(pltpu.get_tpu_info(), "vmem_capacity_bytes", 0)) or None
    except Exception:
        vmem = None
    if vmem is None:
        # v4/v5e/v6e: 128 MiB per TensorCore; v7x: 64 MiB.  Unknown -> assume 64.
        big = ("v4" in kind) or ("v5" in kind) or ("v6" in kind)
        vmem = (128 if big else 64) * _MIB
    is_v7x = ("7" in kind) or (vmem <= 64 * _MIB)
    return vmem, (2 if is_v7x else 1)


_VMEM_CAP, _NUM_TC = _detect_tpu()


# ---------------------------------------------------------------------------
# Kernels.  K (reduction) MUST stay the innermost grid axis ("arbitrary"); the
# output block index is constant along it so the (i, j) tile stays resident.
# ---------------------------------------------------------------------------
def _matmul_kernel_scratch(a_ref, b_ref, o_ref, acc_ref):
    # Narrow output dtypes (bf16/f16/...): accumulate in an f32 VMEM scratch.
    @pl.when(pl.program_id(2) == 0)
    def _():
        acc_ref[...] = jnp.zeros_like(acc_ref)

    acc_ref[...] += jnp.dot(
        a_ref[...], b_ref[...], preferred_element_type=jnp.float32
    )

    @pl.when(pl.program_id(2) == pl.num_programs(2) - 1)
    def _():
        o_ref[...] = acc_ref[...].astype(o_ref.dtype)


def _matmul_kernel_f32(a_ref, b_ref, o_ref):
    # f32 output: accumulate directly into the resident output tile
    # (no scratch, no extra copy on the last K step).
    @pl.when(pl.program_id(2) == 0)
    def _():
        o_ref[...] = jnp.zeros_like(o_ref)

    o_ref[...] += jnp.dot(
        a_ref[...], b_ref[...], preferred_element_type=jnp.float32
    )


# ---------------------------------------------------------------------------
# Tile selection.
# ---------------------------------------------------------------------------
def _vmem_footprint(tm, tn, tk, isa, isb, iso, use_scratch):
    # Double-buffered A, B, O tiles (+ f32 accumulator scratch if used).
    f = 2 * tm * tk * isa + 2 * tk * tn * isb + 2 * tm * tn * iso
    if use_scratch:
        f += tm * tn * 4
    return f


def _select_tiles(M, K, N, a_dtype, b_dtype, out_dtype, use_scratch):
    isa = jnp.dtype(a_dtype).itemsize
    isb = jnp.dtype(b_dtype).itemsize
    iso = jnp.dtype(out_dtype).itemsize

    narrow = max(isa, isb) <= 2
    # 1536-class bf16 output tiles give ~768 flops/byte of streamed A/B traffic
    # (MXU-bound on v6e); 1024-class for f32.  tk=512 amortizes per-grid-step
    # overhead and the per-step accumulator read-modify-write.
    target_mn = 1536 if narrow else 1024
    target_k = 512

    # Dims that fit in one block use the full dim (legal even when unaligned,
    # avoids any M/N padding); larger dims use 256-multiple tiles.
    tm = M if M <= target_mn else target_mn
    tn = N if N <= target_mn else target_mn
    tk = _round_up(K, 128) if K <= target_k else target_k  # K is zero-padded to tk

    # Shrink until the working set fits the per-generation VMEM budget
    # (v7x: 64 MiB/core, v5e/v6e: 128 MiB/core).
    budget = int(_VMEM_CAP * 0.55)
    while _vmem_footprint(tm, tn, tk, isa, isb, iso, use_scratch) > budget:
        if tk > 256:
            tk = max(256, _round_up(tk, 256) - 256)
        elif tm >= tn and tm > 256:
            tm = max(256, _round_up(tm, 256) - 256)
        elif tn > 256:
            tn = max(256, _round_up(tn, 256) - 256)
        else:
            break

    # Megacore: v7x has 2 TensorCores; guarantee >= 2 blocks along the parallel
    # (i, j) axes so both cores get work.
    if _NUM_TC >= 2 and _cdiv(M, tm) * _cdiv(N, tn) < 2:
        align_m = max(_sublane_packing(a_dtype), _sublane_packing(out_dtype))
        cand_n = _round_up(_cdiv(N, 2), 128)
        cand_m = _round_up(_cdiv(M, 2), align_m)
        if _cdiv(N, cand_n) >= 2:
            tn = cand_n
        elif _cdiv(M, cand_m) >= 2:
            tm = cand_m

    return tm, tn, tk


# ---------------------------------------------------------------------------
# Public wrapper.
# ---------------------------------------------------------------------------
@functools.partial(jax.jit, static_argnames=("tm", "tn", "tk", "cast_inputs_to_bf16"))
def pallas_matmul(a, b, *, tm=None, tn=None, tk=None, cast_inputs_to_bf16=False):
    """2-D matmul equivalent to torch.matmul(a, b) for 2-D inputs."""
    # TODO(synk): batched / broadcasted torch.matmul variants (ndim != 2) would
    #             be handled by jax.vmap over this 2-D kernel.
    assert a.ndim == 2 and b.ndim == 2, "only the 2-D matmul path is implemented"
    M, K = a.shape
    K2, N = b.shape
    assert K == K2, f"inner dims must match, got {K} and {K2}"
    out_dtype = jnp.result_type(a.dtype, b.dtype)

    if not (jnp.issubdtype(a.dtype, jnp.floating)
            and jnp.issubdtype(b.dtype, jnp.floating)):
        # TODO(synk): integer matmul has no MXU path on v7x; XLA fallback.
        return jnp.matmul(a, b)

    if cast_inputs_to_bf16:
        # Opt-in accuracy tradeoff: bf16 is the MXU-native input format on
        # v5e/v6e/v7x (f32 x f32 lowers to a multi-pass matmul).
        a = a.astype(jnp.bfloat16)
        b = b.astype(jnp.bfloat16)

    use_scratch = out_dtype != jnp.float32
    tm_s, tn_s, tk_s = _select_tiles(M, K, N, a.dtype, b.dtype, out_dtype, use_scratch)
    tm = tm_s if tm is None else tm
    tn = tn_s if tn is None else tn
    tk = tk_s if tk is None else tk

    # Zero-pad ONLY the reduction dim (required for correctness).  Ragged M/N
    # edges are handled by Pallas partial blocks: out-of-bounds reads only
    # pollute output rows/cols that are never written back, and out-of-bounds
    # writes are dropped — so no extra HBM pad copies and no output slice.
    Kp = _round_up(K, tk)
    if Kp != K:
        a = jnp.pad(a, ((0, 0), (0, Kp - K)))
        b = jnp.pad(b, ((0, Kp - K), (0, 0)))

    grid = (_cdiv(M, tm), _cdiv(N, tn), Kp // tk)

    kernel = _matmul_kernel_scratch if use_scratch else _matmul_kernel_f32
    scratch_shapes = [pltpu.VMEM((tm, tn), jnp.float32)] if use_scratch else []

    isa = jnp.dtype(a.dtype).itemsize
    isb = jnp.dtype(b.dtype).itemsize
    iso = jnp.dtype(out_dtype).itemsize
    footprint = _vmem_footprint(tm, tn, tk, isa, isb, iso, use_scratch)
    # Scoped VMEM: actual footprint + ~35% headroom, capped per generation
    # (<= ~42 MiB on v7x's 64 MiB, <= ~83 MiB on v5e/v6e's 128 MiB).
    vmem_limit = int(min(_VMEM_CAP * 0.65,
                         max(32 * _MIB, 1.35 * footprint + 4 * _MIB)))

    # Actual streamed traffic: the A row-strip is re-read once per N tile, the
    # B column-strip once per M tile.
    cost = pl.CostEstimate(
        flops=2 * M * N * Kp,
        transcendentals=0,
        bytes_accessed=(grid[1] * M * Kp * isa
                        + grid[0] * Kp * N * isb
                        + M * N * iso),
    )

    return pl.pallas_call(
        kernel,
        out_shape=jax.ShapeDtypeStruct((M, N), out_dtype),
        grid_spec=pltpu.PrefetchScalarGridSpec(
            num_scalar_prefetch=0,
            grid=grid,
            in_specs=[
                pl.BlockSpec((tm, tk), lambda i, j, k: (i, k)),
                pl.BlockSpec((tk, tn), lambda i, j, k: (k, j)),
            ],
            out_specs=pl.BlockSpec((tm, tn), lambda i, j, k: (i, j)),
            scratch_shapes=scratch_shapes,
        ),
        compiler_params=pltpu.CompilerParams(
            dimension_semantics=("parallel", "parallel", "arbitrary"),
            vmem_limit_bytes=vmem_limit,
        ),
        cost_estimate=cost,
    )(a, b)


if __name__ == "__main__":
    key = jax.random.PRNGKey(0)
    ka, kb, kc, kd = jax.random.split(key, 4)

    # (M, K) @ (K, N) — small shapes consistent with the module's forward.
    M, K, N = 8, 32, 16
    a = jax.random.normal(ka, (M, K), dtype=jnp.float32)
    b = jax.random.normal(kb, (K, N), dtype=jnp.float32)
    out = jax.block_until_ready(pallas_matmul(a, b))
    ref = jnp.matmul(a, b)
    assert out.shape == ref.shape, (out.shape, ref.shape)
    assert jnp.allclose(out, ref, atol=1e-5, rtol=1e-5), "f32 mismatch"

    # Ragged bf16 case: exercises K zero-padding, the f32 scratch accumulator,
    # unpadded ragged M/N edge blocks and the megacore tile split.
    M2, K2, N2 = 300, 200, 130
    a2 = jax.random.normal(kc, (M2, K2), dtype=jnp.bfloat16)
    b2 = jax.random.normal(kd, (K2, N2), dtype=jnp.bfloat16)
    out2 = jax.block_until_ready(pallas_matmul(a2, b2))
    ref2 = jnp.matmul(a2.astype(jnp.float32), b2.astype(jnp.float32)).astype(
        jnp.bfloat16
    )
    assert out2.shape == ref2.shape, (out2.shape, ref2.shape)
    assert jnp.allclose(
        out2.astype(jnp.float32), ref2.astype(jnp.float32), atol=1e-1, rtol=5e-2
    ), "bf16 mismatch"

    # Opt-in bf16 input cast for f32 operands (MXU-native path).
    out3 = jax.block_until_ready(pallas_matmul(a, b, cast_inputs_to_bf16=True))
    assert out3.shape == ref.shape and out3.dtype == ref.dtype
    assert jnp.allclose(out3, ref, atol=5e-1, rtol=5e-2), "bf16-cast mismatch"

    print("KERNEL_OK")
</pallas_src>

<mosaic_0001>
module attributes {stable_mosaic.version = 11 : i64} {
  func.func @_matmul_kernel_f32(%arg0: i32, %arg1: i32, %arg2: i32, %arg3: memref<8x128xf32, #tpu.memory_space<vmem>>, %arg4: memref<128x16xf32, #tpu.memory_space<vmem>>, %arg5: memref<8x16xf32, #tpu.memory_space<vmem>>) attributes {dimension_semantics = [#tpu.dimension_semantics<parallel>, #tpu.dimension_semantics<parallel>, #tpu.dimension_semantics<arbitrary>], iteration_bounds = array<i64: 1, 1, 1>, scalar_prefetch = 0 : i64, scratch_operands = 0 : i64, tpu.core_type = #tpu.core_type<tc>, window_params = [{transform_indices = @transform_0, window_bounds = array<i64: 8, 128>}, {transform_indices = @transform_1, window_bounds = array<i64: 128, 16>}, {transform_indices = @transform_2, window_bounds = array<i64: 8, 16>}]} {
    %c0_i32 = arith.constant 0 : i32
    %0 = arith.cmpi eq, %arg2, %c0_i32 : i32
    %1 = arith.extui %0 : i1 to i32
    %c0_i32_0 = arith.constant 0 : i32
    %2 = arith.cmpi ne, %1, %c0_i32_0 : i32
    scf.if %2 {
      %cst_8 = arith.constant 0.000000e+00 : f32
      %9 = vector.broadcast %cst_8 : f32 to vector<8x16xf32>
      %c0_9 = arith.constant 0 : index
      %c0_10 = arith.constant 0 : index
      %10 = vector.load %arg5[%c0_9, %c0_10] : memref<8x16xf32, #tpu.memory_space<vmem>>, vector<8x16xf32>
      tpu.vector_store %arg5[%c0_9, %c0_10], %9 {strides = array<i32>} : memref<8x16xf32, #tpu.memory_space<vmem>>, vector<8x16xf32>,
    } else {
    }
    %c0 = arith.constant 0 : index
    %c0_1 = arith.constant 0 : index
    %3 = vector.load %arg5[%c0, %c0_1] : memref<8x16xf32, #tpu.memory_space<vmem>>, vector<8x16xf32>
    %c0_2 = arith.constant 0 : index
    %c0_3 = arith.constant 0 : index
    %4 = vector.load %arg3[%c0_2, %c0_3] : memref<8x128xf32, #tpu.memory_space<vmem>>, vector<8x128xf32>
    %c0_4 = arith.constant 0 : index
    %c0_5 = arith.constant 0 : index
    %5 = vector.load %arg4[%c0_4, %c0_5] : memref<128x16xf32, #tpu.memory_space<vmem>>, vector<128x16xf32>
    %cst = arith.constant dense<0.000000e+00> : vector<8x16xf32>
    %6 = tpu.matmul %4, %5, %cst {dimension_numbers = #tpu.dot_dimension_numbers<[1], [0], [0], [1], [0, 0, 1, 1], [], []>} : vector<8x128xf32>, vector<128x16xf32>, vector<8x16xf32> -> vector<8x16xf32>
    %7 = arith.addf %3, %6 : vector<8x16xf32>
    %c0_6 = arith.constant 0 : index
    %c0_7 = arith.constant 0 : index
    %8 = vector.load %arg5[%c0_6, %c0_7] : memref<8x16xf32, #tpu.memory_space<vmem>>, vector<8x16xf32>
    tpu.vector_store %arg5[%c0_6, %c0_7], %7 {strides = array<i32>} : memref<8x16xf32, #tpu.memory_space<vmem>>, vector<8x16xf32>,
    return
  }
  func.func @transform_0(%arg0: i32, %arg1: i32, %arg2: i32) -> (i32, i32) {
    %c0_i32 = arith.constant 0 : i32
    return %arg0, %arg2 : i32, i32
  }
  func.func @transform_1(%arg0: i32, %arg1: i32, %arg2: i32) -> (i32, i32) {
    %c0_i32 = arith.constant 0 : i32
    return %arg2, %arg1 : i32, i32
  }
  func.func @transform_2(%arg0: i32, %arg1: i32, %arg2: i32) -> (i32, i32) {
    %c0_i32 = arith.constant 0 : i32
    return %arg0, %arg1 : i32, i32
  }
}

</mosaic_0001>

<llo_original>
// kernel: pallas_matmul.1
$region0: #{pallas_matmul.1}
  #allocation0 [shape = 'u32[]', space=smem, size = 0x4, offset = 0x4, fixed_abs, tag = 'smem constant byte address 0x4 - core index']
  #allocation1 [shape = 'u32[144,128]{1,0:T(1,128)}', space=vmem, size = 0x12000, scoped, tag = 'internal scratch']
  %s0 = inlined_call_operand.vmem [shape: f32[8,128], index: 0, kind: input, shape index: {}]
  %s1 = inlined_call_operand.vmem [shape: f32[128,16], index: 1, kind: input, shape index: {}]
  %s2 = inlined_call_operand.hbm [shape: f32[8,16], index: 2, kind: output, shape index: {}]
  %s3 = sld [smem:[#allocation0]]
  $region22: #{pallas_matmul.1} parent=0
    _
  %s5 = ssub.s32 1, %s3
  %s6 = scalar_select 0, %s5, %s3
  $region1: #{pallas_matmul.1} parent=0
    #allocation2 [shape = 'u8[4096]{0}', space=vmem, size = 0x1000, scoped, tag = 'output window, operand 0, single buffered']
    #allocation3 [shape = 's32[1]{0}', space=sflag, size = 0x4, scoped, tag = 'scoped memory for pallas_matmul.1']
    %7 = vsyncpa [#allocation3], 0
    // Predicated region
    $region2: #{pallas_matmul.1} parent=1 // pred_check
      _
    $region3: #{pallas_matmul.1} parent=1 // pred_check_branch
      %9 = sbr.rel (0) target = $region5
    $region4: #{pallas_matmul.1} parent=1 // pred_region
      _
    $region5: #{pallas_matmul.1} parent=1 // pred_fallthru
      _
    // Predicated region
    $region6: #{pallas_matmul.1} parent=1 // pred_check
      _
    $region7: #{pallas_matmul.1} parent=1 // pred_check_branch
      %11 = sbr.rel (0) target = $region9
    $region8: #{pallas_matmul.1} parent=1 // pred_region
      _
    $region9: #{pallas_matmul.1} parent=1 // pred_fallthru
      _
    %p12 = scmp.eq.s32.totalorder 0, 0
    // Predicated region
    $region10: #{pallas_matmul.1} parent=1 // pred_check
      %p13 = pneg %p12
    $region11: #{pallas_matmul.1} parent=1 // pred_check_branch
      %15 = sbr.rel (%p13) target = $region13
    $region12: #{pallas_matmul.1} parent=1 // pred_region
      %vm16 = vcmask 130048
      %17 = vst.msk [vmem:[#allocation2] sm:$0xff] %vm16, 0.0
    $region13: #{pallas_matmul.1} parent=1 // pred_fallthru
      _
    %v18 = vld [vmem:[#allocation2] sm:$0xff]
    %v19 = vld [vmem:[%s0] sm:$0xff]
    %v20 = vld [vmem:[%s1] sm:$0xff]
    %v21 = vld [vmem:[%s1 + $0x8] sm:$0xff]
    %v22 = vld [vmem:[%s1 + $0x10] sm:$0xff]
    %v23 = vld [vmem:[%s1 + $0x18] sm:$0xff]
    %v24 = vld [vmem:[%s1 + $0x20] sm:$0xff]
    %v25 = vld [vmem:[%s1 + $0x28] sm:$0xff]
    %v26 = vld [vmem:[%s1 + $0x30] sm:$0xff]
    %v27 = vld [vmem:[%s1 + $0x38] sm:$0xff]
    %v28 = vld [vmem:[%s1 + $0x40] sm:$0xff]
    %v29 = vld [vmem:[%s1 + $0x48] sm:$0xff]
    %v30 = vld [vmem:[%s1 + $0x50] sm:$0xff]
    %v31 = vld [vmem:[%s1 + $0x58] sm:$0xff]
    %v32 = vld [vmem:[%s1 + $0x60] sm:$0xff]
    %v33 = vld [vmem:[%s1 + $0x68] sm:$0xff]
    %v34 = vld [vmem:[%s1 + $0x70] sm:$0xff]
    %v35 = vld [vmem:[%s1 + $0x78] sm:$0xff]
    %36 = vmatprep.subr.mxu0 0.0
    %37 = vmatpush1.msra.mxu0 %v35
    %38 = vmatprep.subr.mxu0 0.0
    %39 = vmatpush1.msra.mxu0 %v34
    %40 = vmatprep.subr.mxu0 0.0
    %41 = vmatpush1.msra.mxu0 %v33
    %42 = vmatprep.subr.mxu0 0.0
    %43 = vmatpush1.msra.mxu0 %v32
    %44 = vmatprep.subr.mxu0 0.0
    %45 = vmatpush1.msra.mxu0 %v31
    %46 = vmatprep.subr.mxu0 0.0
    %47 = vmatpush1.msra.mxu0 %v30
    %48 = vmatprep.subr.mxu0 0.0
    %49 = vmatpush1.msra.mxu0 %v29
    %50 = vmatprep.subr.mxu0 0.0
    %51 = vmatpush1.msra.mxu0 %v28
    %52 = vmatprep.subr.mxu0 0.0
    %53 = vmatpush1.msra.mxu0 %v27
    %54 = vmatprep.subr.mxu0 0.0
    %55 = vmatpush1.msra.mxu0 %v26
    %56 = vmatprep.subr.mxu0 0.0
    %57 = vmatpush1.msra.mxu0 %v25
    %58 = vmatprep.subr.mxu0 0.0
    %59 = vmatpush1.msra.mxu0 %v24
    %60 = vmatprep.subr.mxu0 0.0
    %61 = vmatpush1.msra.mxu0 %v23
    %62 = vmatprep.subr.mxu0 0.0
    %63 = vmatpush1.msra.mxu0 %v22
    %64 = vmatprep.subr.mxu0 0.0
    %65 = vmatpush1.msra.mxu0 %v21
    %66 = vmatprep.subr.mxu0 0.0
    %67 = vmatpush1.msra.mxu0 %v20
    %68 = vmatprep.subr.mxu0 0.0
    %69 = vmatpush2.msra.mxu0 0.0
    %70 = vmatprep.subr.mxu0 0.0
    %71 = vmatpush2.msra.mxu0 0.0
    %72 = vmatprep.subr.mxu0 0.0
    %73 = vmatpush2.msra.mxu0 0.0
    %74 = vmatprep.subr.mxu0 0.0
    %75 = vmatpush2.msra.mxu0 0.0
    %76 = vmatprep.subr.mxu0 0.0
    %77 = vmatpush2.msra.mxu0 0.0
    %78 = vmatprep.subr.mxu0 0.0
    %79 = vmatpush2.msra.mxu0 0.0
    %80 = vmatprep.subr.mxu0 0.0
    %81 = vmatpush2.msra.mxu0 0.0
    %82 = vmatprep.subr.mxu0 0.0
    %83 = vmatpush2.msra.mxu0 0.0
    %84 = vmatprep.subr.mxu0 0.0
    %85 = vmatpush2.msra.mxu0 0.0
    %86 = vmatprep.subr.mxu0 0.0
    %87 = vmatpush2.msra.mxu0 0.0
    %88 = vmatprep.subr.mxu0 0.0
    %89 = vmatpush2.msra.mxu0 0.0
    %90 = vmatprep.subr.mxu0 0.0
    %91 = vmatpush2.msra.mxu0 0.0
    %92 = vmatprep.subr.mxu0 0.0
    %93 = vmatpush2.msra.mxu0 0.0
    %94 = vmatprep.subr.mxu0 0.0
    %95 = vmatpush2.msra.mxu0 0.0
    %96 = vmatprep.subr.mxu0 0.0
    %97 = vmatpush2.msra.mxu0 0.0
    %98 = vmatprep.subr.mxu0 0.0
    %99 = vmatpush2.msra.mxu0 0.0
    %100 = vmatprep.mubr.f32.mxu0 0.0
    %101 = vmatmul.mubr.f32.gmra.mxu0 %v19
    %v102 = vpop.f32.mrf.mxu0
    %v103 = vadd.f32 0.0, %v102
    %v104 = vpop.f32.mrf.mxu0
    %105 = vdwg.mxu0
    %v106 = vadd.f32 %v18, %v103
    %vm107 = vcmask 130048
    %108 = vst.msk [vmem:[#allocation2] sm:$0xff] %vm107, %v106
    // Predicated region
    $region14: #{pallas_matmul.1} parent=1 // pred_check
      _
    $region15: #{pallas_matmul.1} parent=1 // pred_check_branch
      %110 = sbr.rel (0) target = $region17
    $region16: #{pallas_matmul.1} parent=1 // pred_region
      %s112 = ssub.s32 128, 128
      %113 = vsyncadd [#allocation3], %s112
      %s115 = sshll.u32 [#allocation2], 4
      %s116 = int_to_ptr.vmem [resolvable:$true] %s115
      %118 = dma.vmem_to_hbm [thread:$0]  %s116, 128, %s2, [#allocation3]
    $region17: #{pallas_matmul.1} parent=1 // pred_fallthru
      _
    // Predicated region
    $region18: #{pallas_matmul.1} parent=1 // pred_check
      _
    $region19: #{pallas_matmul.1} parent=1 // pred_check_branch
      %120 = sbr.rel (0) target = $region21
    $region20: #{pallas_matmul.1} parent=1 // pred_region
      %121 = dma.done [#allocation3], 128
    $region21: #{pallas_matmul.1} parent=1 // pred_fallthru
      _
    %122 = vsyncpa [#allocation3], 1

</llo_original>
